<compile_context>
chip_gen: v5e
topology: v5e:2x2
jax: 0.10.0
libtpu: 0.0.40
codegen_flags: <defaults>
</compile_context>

<pallas_src>
import jax
import jax.numpy as jnp
from jax.experimental import pallas as pl
from jax.experimental.pallas import tpu as pltpu

# ---- static problem sizes implied by the PyTorch module ----
D_IN, H_IN, W_IN = 16, 7, 7
IN_FLAT = D_IN * H_IN * W_IN                                # 784
KD = KH = KW = 5
OD, OH, OW = D_IN - KD + 1, H_IN - KH + 1, W_IN - KW + 1    # 12, 3, 3
P = OD * OH * OW                                            # 108 output voxels
K = KD * KH * KW                                            # 125 taps (C_in = 1)
C_OUT = 16
F1_IN = C_OUT * P                                           # 1728
F1_OUT, F3_OUT, F4_OUT, F6_OUT = 85, 78, 25, 10

TILE_B_MAX = 256                                            # batch tile (fits v7x 64 MiB VMEM easily)


# ---------------- Pallas kernel ----------------

def fused_forward_kernel(x_ref, weff_ref, w3_ref, w4_ref, b4_ref, w6_ref, o_ref):
    # x_ref: (TILE_B, 784) -> o_ref: (TILE_B, 10); everything stays in VMEM.
    x = x_ref[...]
    # conv (folded) + f1, then f2 (tanh)
    h = jnp.tanh(jnp.dot(x, weff_ref[...], preferred_element_type=jnp.float32))
    # f3
    h = jnp.dot(h, w3_ref[...], preferred_element_type=jnp.float32)
    # f4 + f5
    h = jnp.tanh(jnp.dot(h, w4_ref[...], preferred_element_type=jnp.float32) + b4_ref[...])
    # f6
    logits = jnp.dot(h, w6_ref[...], preferred_element_type=jnp.float32)
    # f7: numerically stable LogSoftmax(dim=1)
    m = jnp.max(logits, axis=-1, keepdims=True)
    s = logits - m
    lse = jnp.log(jnp.sum(jnp.exp(s), axis=-1, keepdims=True))
    o_ref[...] = s - lse


@jax.jit
def forward(x, kparams):
    b = x.shape[0]
    tile_b = b if b <= TILE_B_MAX else TILE_B_MAX
    n_tiles = pl.cdiv(b, tile_b)
    b_pad = n_tiles * tile_b
    if b_pad != b:
        x = jnp.pad(x, ((0, b_pad - b), (0, 0)))            # zero rows -> finite log-softmax, sliced off below

    out = pl.pallas_call(
        fused_forward_kernel,
        out_shape=jax.ShapeDtypeStruct((b_pad, F6_OUT), jnp.float32),
        grid_spec=pltpu.PrefetchScalarGridSpec(
            num_scalar_prefetch=0,
            grid=(n_tiles,),
            in_specs=[
                pl.BlockSpec((tile_b, IN_FLAT), lambda i: (i, 0)),   # batch-tiled input
                pl.BlockSpec((IN_FLAT, F1_OUT), lambda i: (0, 0)),   # resident weights
                pl.BlockSpec((F1_OUT, F3_OUT), lambda i: (0, 0)),
                pl.BlockSpec((F3_OUT, F4_OUT), lambda i: (0, 0)),
                pl.BlockSpec((1, F4_OUT), lambda i: (0, 0)),
                pl.BlockSpec((F4_OUT, F6_OUT), lambda i: (0, 0)),
            ],
            out_specs=pl.BlockSpec((tile_b, F6_OUT), lambda i: (i, 0)),
        ),
        compiler_params=pltpu.CompilerParams(
            dimension_semantics=("parallel",),                # v7x: both TensorCores split the batch
            vmem_limit_bytes=64 * 1024 * 1024,
        ),
    )(x, kparams["w_eff"], kparams["w3_t"], kparams["w4_t"], kparams["b4"], kparams["w6_t"])
    return out[:b]


# ---------------- init-time conv folding (plain JAX, one-time cost) ----------------

def conv_as_matrix(conv_w):
    # conv_w: (C_OUT, KD, KH, KW)  (C_in == 1 squeezed)
    # Returns M (784, 1728) with x_flat @ M == PyTorch channel-major flatten of Conv3d(x).
    w_flat = conv_w.reshape(C_OUT, K)                                   # (16, 125)
    od, oh, ow = jnp.meshgrid(jnp.arange(OD), jnp.arange(OH), jnp.arange(OW), indexing="ij")
    od, oh, ow = od.reshape(-1), oh.reshape(-1), ow.reshape(-1)         # (P,)
    kd, kh, kw = jnp.meshgrid(jnp.arange(KD), jnp.arange(KH), jnp.arange(KW), indexing="ij")
    kd, kh, kw = kd.reshape(-1), kh.reshape(-1), kw.reshape(-1)         # (K,)
    # flat input index touched by output voxel p with tap k
    ii = ((od[:, None] + kd[None, :]) * (H_IN * W_IN)
          + (oh[:, None] + kh[None, :]) * W_IN
          + (ow[:, None] + kw[None, :]))                                # (P, K)
    rows = ii.reshape(-1)                                               # (P*K,), p-major
    cols = jnp.repeat(jnp.arange(P), K)                                 # (P*K,)
    vals = jnp.tile(w_flat.T, (P, 1))                                   # (P*K, C_OUT): row p*K+k -> w[:, k]
    m = jnp.zeros((IN_FLAT, P, C_OUT), jnp.float32)
    m = m.at[rows, cols, :].add(vals)                                   # m[i, p, c] = w[c, k] where i = ii[p, k]
    # channel-major flatten: output index c*P + p
    return m.transpose(0, 2, 1).reshape(IN_FLAT, F1_IN)                 # (784, 1728)


def init_params(key):
    ks = jax.random.split(key, 6)

    def lin(k, fan_in, shape):
        return jax.random.normal(k, shape, jnp.float32) / jnp.sqrt(jnp.float32(fan_in))

    conv_w = lin(ks[0], K, (C_OUT, KD, KH, KW))   # Conv3d(1, 16, 5, bias=False)
    w1 = lin(ks[1], F1_IN, (F1_OUT, F1_IN))       # Linear(1728, 85, bias=False)
    w3 = lin(ks[2], F1_OUT, (F3_OUT, F1_OUT))     # Linear(85, 78, bias=False)
    w4 = lin(ks[3], F3_OUT, (F4_OUT, F3_OUT))     # Linear(78, 25, bias=True)
    b4 = lin(ks[4], F3_OUT, (1, F4_OUT))
    w6 = lin(ks[5], F4_OUT, (F6_OUT, F4_OUT))     # Linear(25, 10, bias=False)

    raw = {"conv_w": conv_w, "w1": w1, "w3": w3, "w4": w4, "b4": b4, "w6": w6}
    w_eff = conv_as_matrix(conv_w) @ w1.T         # (784, 85) — exact fold (no conv bias, no f1 bias)
    kparams = {"w_eff": w_eff, "w3_t": w3.T, "w4_t": w4.T, "b4": b4, "w6_t": w6.T}
    return raw, kparams


# ---------------- pure-JAX reference (for correctness check) ----------------

def reference_forward(x, raw):
    b = x.shape[0]
    xv = x.reshape(b, 1, D_IN, H_IN, W_IN)
    y = jax.lax.conv_general_dilated(
        xv, raw["conv_w"].reshape(C_OUT, 1, KD, KH, KW),
        window_strides=(1, 1, 1), padding="VALID",
        dimension_numbers=("NCDHW", "OIDHW", "NCDHW"))
    y = y.reshape(b, F1_IN)
    h = jnp.tanh(y @ raw["w1"].T)
    h = h @ raw["w3"].T
    h = jnp.tanh(h @ raw["w4"].T + raw["b4"])
    logits = h @ raw["w6"].T
    return jax.nn.log_softmax(logits, axis=-1)


if __name__ == "__main__":
    key = jax.random.PRNGKey(0)
    k_x, k_p = jax.random.split(key)
    B = 2
    x = jax.random.normal(k_x, (B, IN_FLAT), jnp.float32)    # (2, 784), viewed as (2, 1, 16, 7, 7)
    raw, kparams = init_params(k_p)

    out = forward(x, kparams)
    jax.block_until_ready(out)

    assert out.shape == (B, F6_OUT)
    # log-softmax rows should (log-)normalize to ~0
    assert jnp.allclose(jnp.sum(jnp.exp(out), axis=1), 1.0, atol=1e-4)
    # fused/folded kernel must match the explicit conv + MLP reference
    ref = reference_forward(x, raw)
    assert jnp.allclose(out, ref, atol=2e-4, rtol=2e-4)
    print("KERNEL_OK")
</pallas_src>

<mosaic_0001>
module attributes {stable_mosaic.version = 11 : i64} {
  func.func @fused_forward_kernel(%arg0: i32, %arg1: memref<2x784xf32, #tpu.memory_space<vmem>>, %arg2: memref<784x85xf32, #tpu.memory_space<vmem>>, %arg3: memref<85x78xf32, #tpu.memory_space<vmem>>, %arg4: memref<78x25xf32, #tpu.memory_space<vmem>>, %arg5: memref<1x25xf32, #tpu.memory_space<vmem>>, %arg6: memref<25x10xf32, #tpu.memory_space<vmem>>, %arg7: memref<2x10xf32, #tpu.memory_space<vmem>>) attributes {dimension_semantics = [#tpu.dimension_semantics<parallel>], iteration_bounds = array<i64: 1>, scalar_prefetch = 0 : i64, scratch_operands = 0 : i64, tpu.core_type = #tpu.core_type<tc>, window_params = [{transform_indices = @transform_0, window_bounds = array<i64: 2, 784>}, {pipeline_mode = #tpu.pipeline_mode<synchronous>, transform_indices = @transform_1, window_bounds = array<i64: 784, 85>}, {pipeline_mode = #tpu.pipeline_mode<synchronous>, transform_indices = @transform_2, window_bounds = array<i64: 85, 78>}, {pipeline_mode = #tpu.pipeline_mode<synchronous>, transform_indices = @transform_3, window_bounds = array<i64: 78, 25>}, {pipeline_mode = #tpu.pipeline_mode<synchronous>, transform_indices = @transform_4, window_bounds = array<i64: 1, 25>}, {pipeline_mode = #tpu.pipeline_mode<synchronous>, transform_indices = @transform_5, window_bounds = array<i64: 25, 10>}, {transform_indices = @transform_6, window_bounds = array<i64: 2, 10>}]} {
    %c0 = arith.constant 0 : index
    %c0_0 = arith.constant 0 : index
    %0 = vector.load %arg1[%c0, %c0_0] : memref<2x784xf32, #tpu.memory_space<vmem>>, vector<2x784xf32>
    %c0_1 = arith.constant 0 : index
    %c0_2 = arith.constant 0 : index
    %1 = vector.load %arg2[%c0_1, %c0_2] : memref<784x85xf32, #tpu.memory_space<vmem>>, vector<784x85xf32>
    %cst = arith.constant dense<0.000000e+00> : vector<2x85xf32>
    %2 = tpu.matmul %0, %1, %cst {dimension_numbers = #tpu.dot_dimension_numbers<[1], [0], [0], [1], [0, 0, 1, 1], [], []>} : vector<2x784xf32>, vector<784x85xf32>, vector<2x85xf32> -> vector<2x85xf32>
    %3 = math.tanh %2 : vector<2x85xf32>
    %c0_3 = arith.constant 0 : index
    %c0_4 = arith.constant 0 : index
    %4 = vector.load %arg3[%c0_3, %c0_4] : memref<85x78xf32, #tpu.memory_space<vmem>>, vector<85x78xf32>
    %cst_5 = arith.constant dense<0.000000e+00> : vector<2x78xf32>
    %5 = tpu.matmul %3, %4, %cst_5 {dimension_numbers = #tpu.dot_dimension_numbers<[1], [0], [0], [1], [0, 0, 1, 1], [], []>} : vector<2x85xf32>, vector<85x78xf32>, vector<2x78xf32> -> vector<2x78xf32>
    %c0_6 = arith.constant 0 : index
    %c0_7 = arith.constant 0 : index
    %6 = vector.load %arg4[%c0_6, %c0_7] : memref<78x25xf32, #tpu.memory_space<vmem>>, vector<78x25xf32>
    %cst_8 = arith.constant dense<0.000000e+00> : vector<2x25xf32>
    %7 = tpu.matmul %5, %6, %cst_8 {dimension_numbers = #tpu.dot_dimension_numbers<[1], [0], [0], [1], [0, 0, 1, 1], [], []>} : vector<2x78xf32>, vector<78x25xf32>, vector<2x25xf32> -> vector<2x25xf32>
    %c0_9 = arith.constant 0 : index
    %c0_10 = arith.constant 0 : index
    %8 = vector.load %arg5[%c0_9, %c0_10] : memref<1x25xf32, #tpu.memory_space<vmem>>, vector<1x25xf32>
    %9 = vector.broadcast %8 : vector<1x25xf32> to vector<2x25xf32>
    %10 = arith.addf %7, %9 : vector<2x25xf32>
    %11 = math.tanh %10 : vector<2x25xf32>
    %c0_11 = arith.constant 0 : index
    %c0_12 = arith.constant 0 : index
    %12 = vector.load %arg6[%c0_11, %c0_12] : memref<25x10xf32, #tpu.memory_space<vmem>>, vector<25x10xf32>
    %cst_13 = arith.constant dense<0.000000e+00> : vector<2x10xf32>
    %13 = tpu.matmul %11, %12, %cst_13 {dimension_numbers = #tpu.dot_dimension_numbers<[1], [0], [0], [1], [0, 0, 1, 1], [], []>} : vector<2x25xf32>, vector<25x10xf32>, vector<2x10xf32> -> vector<2x10xf32>
    %cst_14 = arith.constant dense<0xFF800000> : vector<2xf32>
    %14 = vector.multi_reduction <maximumf>, %13, %cst_14 [1] : vector<2x10xf32> to vector<2xf32>
    %15 = vector.shape_cast %14 : vector<2xf32> to vector<2x1xf32>
    %16 = vector.broadcast %15 : vector<2x1xf32> to vector<2x10xf32>
    %17 = arith.subf %13, %16 : vector<2x10xf32>
    %18 = math.exp %17 : vector<2x10xf32>
    %cst_15 = arith.constant dense<0.000000e+00> : vector<2xf32>
    %19 = vector.multi_reduction <add>, %18, %cst_15 [1] : vector<2x10xf32> to vector<2xf32>
    %20 = vector.shape_cast %19 : vector<2xf32> to vector<2x1xf32>
    %21 = math.log %20 : vector<2x1xf32>
    %22 = vector.broadcast %21 : vector<2x1xf32> to vector<2x10xf32>
    %23 = arith.subf %17, %22 : vector<2x10xf32>
    %c0_16 = arith.constant 0 : index
    %c0_17 = arith.constant 0 : index
    %24 = vector.load %arg7[%c0_16, %c0_17] : memref<2x10xf32, #tpu.memory_space<vmem>>, vector<2x10xf32>
    tpu.vector_store %arg7[%c0_16, %c0_17], %23 {strides = array<i32>} : memref<2x10xf32, #tpu.memory_space<vmem>>, vector<2x10xf32>,
    return
  }
  func.func @transform_0(%arg0: i32) -> (i32, i32) {
    %c0_i32 = arith.constant 0 : i32
    %c0_i32_0 = arith.constant 0 : i32
    return %arg0, %c0_i32 : i32, i32
  }
  func.func @transform_1(%arg0: i32) -> (i32, i32) {
    %c0_i32 = arith.constant 0 : i32
    %c0_i32_0 = arith.constant 0 : i32
    %c0_i32_1 = arith.constant 0 : i32
    return %c0_i32, %c0_i32_0 : i32, i32
  }
  func.func @transform_2(%arg0: i32) -> (i32, i32) {
    %c0_i32 = arith.constant 0 : i32
    %c0_i32_0 = arith.constant 0 : i32
    %c0_i32_1 = arith.constant 0 : i32
    return %c0_i32, %c0_i32_0 : i32, i32
  }
  func.func @transform_3(%arg0: i32) -> (i32, i32) {
    %c0_i32 = arith.constant 0 : i32
    %c0_i32_0 = arith.constant 0 : i32
    %c0_i32_1 = arith.constant 0 : i32
    return %c0_i32, %c0_i32_0 : i32, i32
  }
  func.func @transform_4(%arg0: i32) -> (i32, i32) {
    %c0_i32 = arith.constant 0 : i32
    %c0_i32_0 = arith.constant 0 : i32
    %c0_i32_1 = arith.constant 0 : i32
    return %c0_i32, %c0_i32_0 : i32, i32
  }
  func.func @transform_5(%arg0: i32) -> (i32, i32) {
    %c0_i32 = arith.constant 0 : i32
    %c0_i32_0 = arith.constant 0 : i32
    %c0_i32_1 = arith.constant 0 : i32
    return %c0_i32, %c0_i32_0 : i32, i32
  }
  func.func @transform_6(%arg0: i32) -> (i32, i32) {
    %c0_i32 = arith.constant 0 : i32
    %c0_i32_0 = arith.constant 0 : i32
    return %arg0, %c0_i32 : i32, i32
  }
}

</mosaic_0001>

<llo_original>
// kernel: forward.1
$region0: #{forward.1}
  #allocation0 [shape = 'u32[]', space=smem, size = 0x4, offset = 0x4, fixed_abs, tag = 'smem constant byte address 0x4 - core index']
  #allocation1 [shape = 'u32[72,128]{1,0:T(1,128)}', space=vmem, size = 0x9000, scoped, tag = 'internal scratch']
  %s0 = inlined_call_operand.vmem [shape: f32[2,784], index: 0, kind: input, shape index: {}]
  %s1 = inlined_call_operand.vmem [shape: f32[784,85], index: 1, kind: input, shape index: {}]
  %s2 = inlined_call_operand.vmem [shape: f32[85,78], index: 2, kind: input, shape index: {}]
  %s3 = inlined_call_operand.vmem [shape: f32[78,25], index: 3, kind: input, shape index: {}]
  %s4 = inlined_call_operand.vmem [shape: f32[1,25], index: 4, kind: input, shape index: {}]
  %s5 = inlined_call_operand.vmem [shape: f32[25,10], index: 5, kind: input, shape index: {}]
  %s6 = inlined_call_operand.hbm [shape: f32[2,10], index: 6, kind: output, shape index: {}]
  %s7 = sld [smem:[#allocation0]]
  $region34: #{forward.1} parent=0
    _
  %s9 = ssub.s32 1, %s7
  %s10 = scalar_select 0, %s9, %s7
  $region1: #{forward.1} parent=0
    #allocation2 [shape = 'u8[1024]{0}', space=vmem, size = 0x400, scoped, tag = 'output window, operand 0, single buffered']
    #allocation3 [shape = 's32[1]{0}', space=sflag, size = 0x4, scoped, tag = 'scoped memory for forward.1']
    %11 = vsyncpa [#allocation3], 0
    // Predicated region
    $region2: #{forward.1} parent=1 // pred_check
      _
    $region3: #{forward.1} parent=1 // pred_check_branch
      %13 = sbr.rel (0) target = $region5
    $region4: #{forward.1} parent=1 // pred_region
      _
    $region5: #{forward.1} parent=1 // pred_fallthru
      _
    // Predicated region
    $region6: #{forward.1} parent=1 // pred_check
      _
    $region7: #{forward.1} parent=1 // pred_check_branch
      %15 = sbr.rel (0) target = $region9
    $region8: #{forward.1} parent=1 // pred_region
      _
    $region9: #{forward.1} parent=1 // pred_fallthru
      _
    // Predicated region
    $region10: #{forward.1} parent=1 // pred_check
      _
    $region11: #{forward.1} parent=1 // pred_check_branch
      %17 = sbr.rel (0) target = $region13
    $region12: #{forward.1} parent=1 // pred_region
      _
    $region13: #{forward.1} parent=1 // pred_fallthru
      _
    // Predicated region
    $region14: #{forward.1} parent=1 // pred_check
      _
    $region15: #{forward.1} parent=1 // pred_check_branch
      %19 = sbr.rel (0) target = $region17
    $region16: #{forward.1} parent=1 // pred_region
      _
    $region17: #{forward.1} parent=1 // pred_fallthru
      _
    // Predicated region
    $region18: #{forward.1} parent=1 // pred_check
      _
    $region19: #{forward.1} parent=1 // pred_check_branch
      %21 = sbr.rel (0) target = $region21
    $region20: #{forward.1} parent=1 // pred_region
      _
    $region21: #{forward.1} parent=1 // pred_fallthru
      _
    // Predicated region
    $region22: #{forward.1} parent=1 // pred_check
      _
    $region23: #{forward.1} parent=1 // pred_check_branch
      %23 = sbr.rel (0) target = $region25
    $region24: #{forward.1} parent=1 // pred_region
      _
    $region25: #{forward.1} parent=1 // pred_fallthru
      _
    %v24 = vld [vmem:[%s0] sm:$0xff]
    %v25 = vld [vmem:[%s0 + $0x8] sm:$0x3f]
    %v26 = vld [vmem:[%s1] sm:$0xff]
    %v27 = vld [vmem:[%s1 + $0x8] sm:$0xff]
    %v28 = vld [vmem:[%s1 + $0x10] sm:$0xff]
    %v29 = vld [vmem:[%s1 + $0x18] sm:$0xff]
    %v30 = vld [vmem:[%s1 + $0x20] sm:$0xff]
    %v31 = vld [vmem:[%s1 + $0x28] sm:$0xff]
    %v32 = vld [vmem:[%s1 + $0x30] sm:$0xff]
    %v33 = vld [vmem:[%s1 + $0x38] sm:$0xff]
    %v34 = vld [vmem:[%s1 + $0x40] sm:$0xff]
    %v35 = vld [vmem:[%s1 + $0x48] sm:$0xff]
    %v36 = vld [vmem:[%s1 + $0x50] sm:$0xff]
    %v37 = vld [vmem:[%s1 + $0x58] sm:$0xff]
    %v38 = vld [vmem:[%s1 + $0x60] sm:$0xff]
    %v39 = vld [vmem:[%s1 + $0x68] sm:$0xff]
    %v40 = vld [vmem:[%s1 + $0x70] sm:$0xff]
    %v41 = vld [vmem:[%s1 + $0x78] sm:$0xff]
    %v42 = vld [vmem:[%s1 + $0x80] sm:$0xff]
    %v43 = vld [vmem:[%s1 + $0x88] sm:$0xff]
    %v44 = vld [vmem:[%s1 + $0x90] sm:$0xff]
    %v45 = vld [vmem:[%s1 + $0x98] sm:$0xff]
    %v46 = vld [vmem:[%s1 + $0xa0] sm:$0xff]
    %v47 = vld [vmem:[%s1 + $0xa8] sm:$0xff]
    %v48 = vld [vmem:[%s1 + $0xb0] sm:$0xff]
    %v49 = vld [vmem:[%s1 + $0xb8] sm:$0xff]
    %v50 = vld [vmem:[%s1 + $0xc0] sm:$0xff]
    %v51 = vld [vmem:[%s1 + $0xc8] sm:$0xff]
    %v52 = vld [vmem:[%s1 + $0xd0] sm:$0xff]
    %v53 = vld [vmem:[%s1 + $0xd8] sm:$0xff]
    %v54 = vld [vmem:[%s1 + $0xe0] sm:$0xff]
    %v55 = vld [vmem:[%s1 + $0xe8] sm:$0xff]
    %v56 = vld [vmem:[%s1 + $0xf0] sm:$0xff]
    %v57 = vld [vmem:[%s1 + $0xf8] sm:$0xff]
    %v58 = vld [vmem:[%s1 + $0x100] sm:$0xff]
    %v59 = vld [vmem:[%s1 + $0x108] sm:$0xff]
    %v60 = vld [vmem:[%s1 + $0x110] sm:$0xff]
    %v61 = vld [vmem:[%s1 + $0x118] sm:$0xff]
    %v62 = vld [vmem:[%s1 + $0x120] sm:$0xff]
    %v63 = vld [vmem:[%s1 + $0x128] sm:$0xff]
    %v64 = vld [vmem:[%s1 + $0x130] sm:$0xff]
    %v65 = vld [vmem:[%s1 + $0x138] sm:$0xff]
    %v66 = vld [vmem:[%s1 + $0x140] sm:$0xff]
    %v67 = vld [vmem:[%s1 + $0x148] sm:$0xff]
    %v68 = vld [vmem:[%s1 + $0x150] sm:$0xff]
    %v69 = vld [vmem:[%s1 + $0x158] sm:$0xff]
    %v70 = vld [vmem:[%s1 + $0x160] sm:$0xff]
    %v71 = vld [vmem:[%s1 + $0x168] sm:$0xff]
    %v72 = vld [vmem:[%s1 + $0x170] sm:$0xff]
    %v73 = vld [vmem:[%s1 + $0x178] sm:$0xff]
    %v74 = vld [vmem:[%s1 + $0x180] sm:$0xff]
    %v75 = vld [vmem:[%s1 + $0x188] sm:$0xff]
    %v76 = vld [vmem:[%s1 + $0x190] sm:$0xff]
    %v77 = vld [vmem:[%s1 + $0x198] sm:$0xff]
    %v78 = vld [vmem:[%s1 + $0x1a0] sm:$0xff]
    %v79 = vld [vmem:[%s1 + $0x1a8] sm:$0xff]
    %v80 = vld [vmem:[%s1 + $0x1b0] sm:$0xff]
    %v81 = vld [vmem:[%s1 + $0x1b8] sm:$0xff]
    %v82 = vld [vmem:[%s1 + $0x1c0] sm:$0xff]
    %v83 = vld [vmem:[%s1 + $0x1c8] sm:$0xff]
    %v84 = vld [vmem:[%s1 + $0x1d0] sm:$0xff]
    %v85 = vld [vmem:[%s1 + $0x1d8] sm:$0xff]
    %v86 = vld [vmem:[%s1 + $0x1e0] sm:$0xff]
    %v87 = vld [vmem:[%s1 + $0x1e8] sm:$0xff]
    %v88 = vld [vmem:[%s1 + $0x1f0] sm:$0xff]
    %v89 = vld [vmem:[%s1 + $0x1f8] sm:$0xff]
    %v90 = vld [vmem:[%s1 + $0x200] sm:$0xff]
    %v91 = vld [vmem:[%s1 + $0x208] sm:$0xff]
    %v92 = vld [vmem:[%s1 + $0x210] sm:$0xff]
    %v93 = vld [vmem:[%s1 + $0x218] sm:$0xff]
    %v94 = vld [vmem:[%s1 + $0x220] sm:$0xff]
    %v95 = vld [vmem:[%s1 + $0x228] sm:$0xff]
    %v96 = vld [vmem:[%s1 + $0x230] sm:$0xff]
    %v97 = vld [vmem:[%s1 + $0x238] sm:$0xff]
    %v98 = vld [vmem:[%s1 + $0x240] sm:$0xff]
    %v99 = vld [vmem:[%s1 + $0x248] sm:$0xff]
    %v100 = vld [vmem:[%s1 + $0x250] sm:$0xff]
    %v101 = vld [vmem:[%s1 + $0x258] sm:$0xff]
    %v102 = vld [vmem:[%s1 + $0x260] sm:$0xff]
    %v103 = vld [vmem:[%s1 + $0x268] sm:$0xff]
    %v104 = vld [vmem:[%s1 + $0x270] sm:$0xff]
    %v105 = vld [vmem:[%s1 + $0x278] sm:$0xff]
    %v106 = vld [vmem:[%s1 + $0x280] sm:$0xff]
    %v107 = vld [vmem:[%s1 + $0x288] sm:$0xff]
    %v108 = vld [vmem:[%s1 + $0x290] sm:$0xff]
    %v109 = vld [vmem:[%s1 + $0x298] sm:$0xff]
    %v110 = vld [vmem:[%s1 + $0x2a0] sm:$0xff]
    %v111 = vld [vmem:[%s1 + $0x2a8] sm:$0xff]
    %v112 = vld [vmem:[%s1 + $0x2b0] sm:$0xff]
    %v113 = vld [vmem:[%s1 + $0x2b8] sm:$0xff]
    %v114 = vld [vmem:[%s1 + $0x2c0] sm:$0xff]
    %v115 = vld [vmem:[%s1 + $0x2c8] sm:$0xff]
    %v116 = vld [vmem:[%s1 + $0x2d0] sm:$0xff]
    %v117 = vld [vmem:[%s1 + $0x2d8] sm:$0xff]
    %v118 = vld [vmem:[%s1 + $0x2e0] sm:$0xff]
    %v119 = vld [vmem:[%s1 + $0x2e8] sm:$0xff]
    %v120 = vld [vmem:[%s1 + $0x2f0] sm:$0xff]
    %v121 = vld [vmem:[%s1 + $0x2f8] sm:$0xff]
    %v122 = vld [vmem:[%s1 + $0x300] sm:$0xff]
    %v123 = vld [vmem:[%s1 + $0x308] sm:$0xff]
    %126 = vst [vmem:[#allocation1] ss:$4 sm:$0xff] %v24
    %s127 = scalar_lea.vmem [#allocation1], 32
    %128 = vst [vmem:[%s127] ss:$4 sm:$0xff] %v25
    %v129 = vld.sshfl [vmem:[#allocation1] sm:$0xff pattern:$0x73625140]
    %v130 = vld.sshfl [vmem:[#allocation1 + $0x8] sm:$0xff pattern:$0x73625140]
    %v131 = vld.sshfl [vmem:[#allocation1 + $0x10] sm:$0xff pattern:$0x73625140]
    %v132 = vld.sshfl [vmem:[#allocation1 + $0x18] sm:$0xff pattern:$0x73625140]
    %v133 = vld.sshfl [vmem:[#allocation1 + $0x20] sm:$0xff pattern:$0x73625140]
    %v134 = vld.sshfl [vmem:[#allocation1 + $0x28] sm:$0xff pattern:$0x73625140]
    %v135 = vld.sshfl [vmem:[#allocation1 + $0x30] sm:$0xff pattern:$0x73625140]
    %vm142 = vcmask 130048
    %v143 = vsel %vm142, %v135, 0
    %145 = vmatpush.msra.mxu0 %v41
    %146 = vmatpush.msra.mxu0 %v40
    %147 = vmatpush.msra.mxu0 %v39
    %148 = vmatpush.msra.mxu0 %v38
    %149 = vmatpush.msra.mxu0 %v37
    %150 = vmatpush.msra.mxu0 %v36
    %151 = vmatpush.msra.mxu0 %v35
    %152 = vmatpush.msra.mxu0 %v34
    %153 = vmatpush.msra.mxu0 %v33
    %154 = vmatpush.msra.mxu0 %v32
    %155 = vmatpush.msra.mxu0 %v31
    %156 = vmatpush.msra.mxu0 %v30
    %157 = vmatpush.msra.mxu0 %v29
    %158 = vmatpush.msra.mxu0 %v28
    %159 = vmatpush.msra.mxu0 %v27
    %160 = vmatpush.msra.mxu0 %v26
    %161 = vmatmul.f32.gmra.mxu0 %v129
    %v162 = vpop.f32.mrf.mxu0
    %v163 = vadd.f32 0.0, %v162
    %164 = vdwg.mxu0
    %165 = vmatpush.msra.mxu0 %v57
    %166 = vmatpush.msra.mxu0 %v56
    %167 = vmatpush.msra.mxu0 %v55
    %168 = vmatpush.msra.mxu0 %v54
    %169 = vmatpush.msra.mxu0 %v53
    %170 = vmatpush.msra.mxu0 %v52
    %171 = vmatpush.msra.mxu0 %v51
    %172 = vmatpush.msra.mxu0 %v50
    %173 = vmatpush.msra.mxu0 %v49
    %174 = vmatpush.msra.mxu0 %v48
    %175 = vmatpush.msra.mxu0 %v47
    %176 = vmatpush.msra.mxu0 %v46
    %177 = vmatpush.msra.mxu0 %v45
    %178 = vmatpush.msra.mxu0 %v44
    %179 = vmatpush.msra.mxu0 %v43
    %180 = vmatpush.msra.mxu0 %v42
    %181 = vmatmul.f32.gmra.mxu0 %v130
    %v182 = vpop.f32.mrf.mxu0
    %v183 = vadd.f32 %v163, %v182
    %184 = vdwg.mxu0
    %185 = vmatpush.msra.mxu0 %v73
    %186 = vmatpush.msra.mxu0 %v72
    %187 = vmatpush.msra.mxu0 %v71
    %188 = vmatpush.msra.mxu0 %v70
    %189 = vmatpush.msra.mxu0 %v69
    %190 = vmatpush.msra.mxu0 %v68
    %191 = vmatpush.msra.mxu0 %v67
    %192 = vmatpush.msra.mxu0 %v66
    %193 = vmatpush.msra.mxu0 %v65
    %194 = vmatpush.msra.mxu0 %v64
    %195 = vmatpush.msra.mxu0 %v63
    %196 = vmatpush.msra.mxu0 %v62
    %197 = vmatpush.msra.mxu0 %v61
    %198 = vmatpush.msra.mxu0 %v60
    %199 = vmatpush.msra.mxu0 %v59
    %200 = vmatpush.msra.mxu0 %v58
    %201 = vmatmul.f32.gmra.mxu0 %v131
    %v202 = vpop.f32.mrf.mxu0
    %v203 = vadd.f32 %v183, %v202
    %204 = vdwg.mxu0
    %205 = vmatpush.msra.mxu0 %v89
    %206 = vmatpush.msra.mxu0 %v88
    %207 = vmatpush.msra.mxu0 %v87
    %208 = vmatpush.msra.mxu0 %v86
    %209 = vmatpush.msra.mxu0 %v85
    %210 = vmatpush.msra.mxu0 %v84
    %211 = vmatpush.msra.mxu0 %v83
    %212 = vmatpush.msra.mxu0 %v82
    %213 = vmatpush.msra.mxu0 %v81
    %214 = vmatpush.msra.mxu0 %v80
    %215 = vmatpush.msra.mxu0 %v79
    %216 = vmatpush.msra.mxu0 %v78
    %217 = vmatpush.msra.mxu0 %v77
    %218 = vmatpush.msra.mxu0 %v76
    %219 = vmatpush.msra.mxu0 %v75
    %220 = vmatpush.msra.mxu0 %v74
    %221 = vmatmul.f32.gmra.mxu0 %v132
    %v222 = vpop.f32.mrf.mxu0
    %v223 = vadd.f32 %v203, %v222
    %224 = vdwg.mxu0
    %225 = vmatpush.msra.mxu0 %v105
    %226 = vmatpush.msra.mxu0 %v104
    %227 = vmatpush.msra.mxu0 %v103
    %228 = vmatpush.msra.mxu0 %v102
    %229 = vmatpush.msra.mxu0 %v101
    %230 = vmatpush.msra.mxu0 %v100
    %231 = vmatpush.msra.mxu0 %v99
    %232 = vmatpush.msra.mxu0 %v98
    %233 = vmatpush.msra.mxu0 %v97
    %234 = vmatpush.msra.mxu0 %v96
    %235 = vmatpush.msra.mxu0 %v95
    %236 = vmatpush.msra.mxu0 %v94
    %237 = vmatpush.msra.mxu0 %v93
    %238 = vmatpush.msra.mxu0 %v92
    %239 = vmatpush.msra.mxu0 %v91
    %240 = vmatpush.msra.mxu0 %v90
    %241 = vmatmul.f32.gmra.mxu0 %v133
    %v242 = vpop.f32.mrf.mxu0
    %v243 = vadd.f32 %v223, %v242
    %244 = vdwg.mxu0
    %245 = vmatpush.msra.mxu0 %v121
    %246 = vmatpush.msra.mxu0 %v120
    %247 = vmatpush.msra.mxu0 %v119
    %248 = vmatpush.msra.mxu0 %v118
    %249 = vmatpush.msra.mxu0 %v117
    %250 = vmatpush.msra.mxu0 %v116
    %251 = vmatpush.msra.mxu0 %v115
    %252 = vmatpush.msra.mxu0 %v114
    %253 = vmatpush.msra.mxu0 %v113
    %254 = vmatpush.msra.mxu0 %v112
    %255 = vmatpush.msra.mxu0 %v111
    %256 = vmatpush.msra.mxu0 %v110
    %257 = vmatpush.msra.mxu0 %v109
    %258 = vmatpush.msra.mxu0 %v108
    %259 = vmatpush.msra.mxu0 %v107
    %260 = vmatpush.msra.mxu0 %v106
    %261 = vmatmul.f32.gmra.mxu0 %v134
    %v262 = vpop.f32.mrf.mxu0
    %v263 = vadd.f32 %v243, %v262
    %264 = vdwg.mxu0
    %265 = vmatpush.msra.mxu0 0.0
    %266 = vmatpush.msra.mxu0 0.0
    %267 = vmatpush.msra.mxu0 0.0
    %268 = vmatpush.msra.mxu0 0.0
    %269 = vmatpush.msra.mxu0 0.0
    %270 = vmatpush.msra.mxu0 0.0
    %271 = vmatpush.msra.mxu0 0.0
    %272 = vmatpush.msra.mxu0 0.0
    %273 = vmatpush.msra.mxu0 0.0
    %274 = vmatpush.msra.mxu0 0.0
    %275 = vmatpush.msra.mxu0 0.0
    %276 = vmatpush.msra.mxu0 0.0
    %277 = vmatpush.msra.mxu0 0.0
    %278 = vmatpush.msra.mxu0 0.0
    %279 = vmatpush.msra.mxu0 %v123
    %280 = vmatpush.msra.mxu0 %v122
    %281 = vmatmul.f32.gmra.mxu0 %v143
    %v282 = vpop.f32.mrf.mxu0
    %v283 = vadd.f32 %v263, %v282
    %284 = vdwg.mxu0
    %v285 = vtanh.pop %v283
    %v286 = vld [vmem:[%s2] sm:$0xff]
    %v287 = vld [vmem:[%s2 + $0x8] sm:$0xff]
    %v288 = vld [vmem:[%s2 + $0x10] sm:$0xff]
    %v289 = vld [vmem:[%s2 + $0x18] sm:$0xff]
    %v290 = vld [vmem:[%s2 + $0x20] sm:$0xff]
    %v291 = vld [vmem:[%s2 + $0x28] sm:$0xff]
    %v292 = vld [vmem:[%s2 + $0x30] sm:$0xff]
    %v293 = vld [vmem:[%s2 + $0x38] sm:$0xff]
    %v294 = vld [vmem:[%s2 + $0x40] sm:$0xff]
    %v295 = vld [vmem:[%s2 + $0x48] sm:$0xff]
    %v296 = vld [vmem:[%s2 + $0x50] sm:$0x1f]
    %vm297 = vcmask 695296
    %v299 = vsel %vm297, %v285, 0
    %vm301 = vcmask 1044480
    %v303 = vsel %vm301, %v296, 0
    %305 = vmatpush.msra.mxu0 0.0
    %306 = vmatpush.msra.mxu0 0.0
    %307 = vmatpush.msra.mxu0 0.0
    %308 = vmatpush.msra.mxu0 0.0
    %309 = vmatpush.msra.mxu0 0.0
    %310 = vmatpush.msra.mxu0 %v303
    %311 = vmatpush.msra.mxu0 %v295
    %312 = vmatpush.msra.mxu0 %v294
    %313 = vmatpush.msra.mxu0 %v293
    %314 = vmatpush.msra.mxu0 %v292
    %315 = vmatpush.msra.mxu0 %v291
    %316 = vmatpush.msra.mxu0 %v290
    %317 = vmatpush.msra.mxu0 %v289
    %318 = vmatpush.msra.mxu0 %v288
    %319 = vmatpush.msra.mxu0 %v287
    %320 = vmatpush.msra.mxu0 %v286
    %321 = vmatmul.f32.gmra.mxu0 %v299
    %v322 = vpop.f32.mrf.mxu0
    %v323 = vadd.f32 0.0, %v322
    %324 = vdwg.mxu0
    %v325 = vld [vmem:[%s3] sm:$0xff]
    %v326 = vld [vmem:[%s3 + $0x8] sm:$0xff]
    %v327 = vld [vmem:[%s3 + $0x10] sm:$0xff]
    %v328 = vld [vmem:[%s3 + $0x18] sm:$0xff]
    %v329 = vld [vmem:[%s3 + $0x20] sm:$0xff]
    %v330 = vld [vmem:[%s3 + $0x28] sm:$0xff]
    %v331 = vld [vmem:[%s3 + $0x30] sm:$0xff]
    %v332 = vld [vmem:[%s3 + $0x38] sm:$0xff]
    %v333 = vld [vmem:[%s3 + $0x40] sm:$0xff]
    %v334 = vld [vmem:[%s3 + $0x48] sm:$0x3f]
    %v335 = vld [vmem:[%s4] sm:$0x1]
    %v337 = vperm.slane %v335, 0
    %vm339 = vcmask 637952
    %v341 = vsel %vm339, %v323, 0
    %vm343 = vcmask 1045504
    %v345 = vsel %vm343, %v334, 0
    %347 = vmatpush.msra.mxu0 0.0
    %348 = vmatpush.msra.mxu0 0.0
    %349 = vmatpush.msra.mxu0 0.0
    %350 = vmatpush.msra.mxu0 0.0
    %351 = vmatpush.msra.mxu0 0.0
    %352 = vmatpush.msra.mxu0 0.0
    %353 = vmatpush.msra.mxu0 %v345
    %354 = vmatpush.msra.mxu0 %v333
    %355 = vmatpush.msra.mxu0 %v332
    %356 = vmatpush.msra.mxu0 %v331
    %357 = vmatpush.msra.mxu0 %v330
    %358 = vmatpush.msra.mxu0 %v329
    %359 = vmatpush.msra.mxu0 %v328
    %360 = vmatpush.msra.mxu0 %v327
    %361 = vmatpush.msra.mxu0 %v326
    %362 = vmatpush.msra.mxu0 %v325
    %363 = vmatmul.f32.gmra.mxu0 %v341
    %v364 = vpop.f32.mrf.mxu0
    %v365 = vadd.f32 %v337, %v364
    %366 = vdwg.mxu0
    %v367 = vtanh.pop %v365
    %v368 = vld [vmem:[%s5] sm:$0xff]
    %v369 = vld [vmem:[%s5 + $0x8] sm:$0xff]
    %v370 = vld [vmem:[%s5 + $0x10] sm:$0xff]
    %v371 = vld [vmem:[%s5 + $0x18] sm:$0x1]
    %vm372 = vcmask 203776
    %v374 = vsel %vm372, %v367, 0
    %vm376 = vcmask 1040384
    %v378 = vsel %vm376, %v371, 0
    %380 = vmatpush.msra.mxu0 0.0
    %381 = vmatpush.msra.mxu0 0.0
    %382 = vmatpush.msra.mxu0 0.0
    %383 = vmatpush.msra.mxu0 0.0
    %384 = vmatpush.msra.mxu0 0.0
    %385 = vmatpush.msra.mxu0 0.0
    %386 = vmatpush.msra.mxu0 0.0
    %387 = vmatpush.msra.mxu0 0.0
    %388 = vmatpush.msra.mxu0 0.0
    %389 = vmatpush.msra.mxu0 0.0
    %390 = vmatpush.msra.mxu0 0.0
    %391 = vmatpush.msra.mxu0 0.0
    %392 = vmatpush.msra.mxu0 %v378
    %393 = vmatpush.msra.mxu0 %v370
    %394 = vmatpush.msra.mxu0 %v369
    %395 = vmatpush.msra.mxu0 %v368
    %396 = vmatmul.f32.gmra.mxu0 %v374
    %v397 = vpop.f32.mrf.mxu0
    %v398 = vadd.f32 0.0, %v397
    %399 = vdwg.mxu0
    %vm400 = vcmask 74752
    %v401 = vsel %vm400, %v398, -inf
    %402 = vmax.xlane.f32.xlu0 %v401
    %v403 = vpop.xlane.xlu0 %402
    %v404 = vsub.f32 %v398, %v403
    %v405 = vmul.f32 %v404, 1.442695
    %v406 = vpow.pop %v405
    %v407 = vsel %vm400, %v406, 0.0
    %408 = vadd.xlane.f32.xlu0 %v407
    %v409 = vpop.xlane.xlu0 %408
    %v410 = vlog2.pop %v409
    %v411 = vmul.f32 %v410, 0.6931472
    %v412 = vsub.f32 %v404, %v411
    %413 = vst.msk [vmem:[#allocation2] sm:$0x3] %vm400, %v412
    // Predicated region
    $region26: #{forward.1} parent=1 // pred_check
      _
    $region27: #{forward.1} parent=1 // pred_check_branch
      %415 = sbr.rel (0) target = $region29
    $region28: #{forward.1} parent=1 // pred_region
      %417 = vsyncadd [#allocation3], 0
      %s419 = sshll.u32 [#allocation2], 4
      %s420 = int_to_ptr.vmem [resolvable:$true] %s419
      %s421 = sshll.u32 %s6, 4
      %s422 = int_to_ptr.hbm [resolvable:$true] %s421
      %424 = dma.vmem_to_hbm [thread:$0]  %s420, 32, %s422, [#allocation3]
    $region29: #{forward.1} parent=1 // pred_fallthru
      _
    // Predicated region
    $region30: #{forward.1} parent=1 // pred_check
      _
    $region31: #{forward.1} parent=1 // pred_check_branch
      %426 = sbr.rel (0) target = $region33
    $region32: #{forward.1} parent=1 // pred_region
      %428 = dma.done [#allocation3], 32
    $region33: #{forward.1} parent=1 // pred_fallthru
      _
    %429 = vsyncpa [#allocation3], 1

</llo_original>
